<compile_context>
chip_gen: v7x
topology: tpu7x:2x2x1
jax: 0.10.0
libtpu: 0.0.40
codegen_flags: <defaults>
</compile_context>

<pallas_src>
import jax
import jax.numpy as jnp
from jax.experimental import pallas as pl
from jax.experimental.pallas import tpu as pltpu

C_HID = 8                   # hidden channel count of conv_1 / conv_2
_TILE_LANES = 1024          # lane-tile width for the batched / grid path
_GRIDLESS_MAX_LANES = 4096  # below this, run as a single un-gridded block


def _fused_1x1_kernel(a_ref, b_ref, w3_ref, b3_ref, x_ref, o_ref):
    # x_ref / o_ref: (8, LANES) f32 tiles in VMEM -- pixels, lane-dense.
    # a/b/w3/b3 refs: small 1-D f32 arrays in SMEM, read as scalars and used
    # directly as scalar operands of VPU FMAs (no broadcasts, no MXU).
    x = x_ref[...]

    # Folded conv_1+conv_2, then tanh:  t[c] = tanh(A[c]*x + B[c])
    t = [jnp.tanh(a_ref[c] * x + b_ref[c]) for c in range(C_HID)]

    # conv_3: weighted channel sum, pairwise tree reduction (depth 3).
    p = [t[c] * w3_ref[c] for c in range(C_HID)]
    s0 = p[0] + p[1]
    s1 = p[2] + p[3]
    s2 = p[4] + p[5]
    s3 = p[6] + p[7]
    o_ref[...] = (s0 + s1) + (s2 + s3) + b3_ref[0]


def init_params(key):
    """Deterministic params matching the PyTorch module's logical shapes.

    conv_1: weight (8, 1), bias (8,)
    conv_2: weight (8, 8), bias (8,)   [out_ch, in_ch]
    conv_3: weight (1, 8), bias (1,)
    """
    k1, k2, k3, k4, k5, k6 = jax.random.split(key, 6)
    return dict(
        w1=jax.random.normal(k1, (8, 1), jnp.float32) * 0.5,
        b1=jax.random.normal(k2, (8,), jnp.float32) * 0.1,
        w2=jax.random.normal(k3, (8, 8), jnp.float32) * 0.5,
        b2=jax.random.normal(k4, (8,), jnp.float32) * 0.1,
        w3=jax.random.normal(k5, (1, 8), jnp.float32) * 0.5,
        b3=jax.random.normal(k6, (1,), jnp.float32) * 0.1,
    )


def pack_params(params):
    """Fold conv_1 into conv_2 (exact, since in_channels == 1) once, offline."""
    w1 = params["w1"].reshape(C_HID).astype(jnp.float32)   # (8,)
    b1 = params["b1"].astype(jnp.float32)                  # (8,)
    w2 = params["w2"].astype(jnp.float32)                  # (8, 8) [out, in]
    b2 = params["b2"].astype(jnp.float32)                  # (8,)
    return dict(
        a=(w2 @ w1).astype(jnp.float32),                   # (8,)  A = w2 @ w1
        b=(w2 @ b1 + b2).astype(jnp.float32),              # (8,)  B = w2 @ b1 + b2
        w3=params["w3"].reshape(C_HID).astype(jnp.float32),  # (8,)
        b3=params["b3"].astype(jnp.float32),                 # (1,)
    )


def model_tanh_forward(x_nchw, packed):
    N, C, H, W = x_nchw.shape
    assert C == 1, "ModelTanh (and the conv_1 fold) requires in_channels == 1"
    x_flat = x_nchw.reshape(-1).astype(jnp.float32)
    n_pix = x_flat.shape[0]

    smem = pl.BlockSpec(memory_space=pltpu.MemorySpace.SMEM)
    scalars = (packed["a"], packed["b"], packed["w3"], packed["b3"])

    if n_pix % 8 == 0 and (n_pix // 8) <= _GRIDLESS_MAX_LANES:
        # Small case (covers the spec's 1x1x28x28 input): a single un-gridded
        # VMEM block.  Pure reshapes only -- no pad / slice ops in the wrapper;
        # Mosaic masks the partial lane tile internally.
        lanes = n_pix // 8
        out_tile = pl.pallas_call(
            _fused_1x1_kernel,
            out_shape=jax.ShapeDtypeStruct((8, lanes), jnp.float32),
            in_specs=[smem, smem, smem, smem,
                      pl.BlockSpec(memory_space=pltpu.MemorySpace.VMEM)],
            out_specs=pl.BlockSpec(memory_space=pltpu.MemorySpace.VMEM),
        )(*scalars, x_flat.reshape(8, lanes))
        return out_tile.reshape(N, 1, H, W)

    # Batched case: 1-D grid over (8, _TILE_LANES) pixel tiles, marked
    # "parallel" so it shards across TensorCores (v7x megacore) and
    # double-buffers the HBM<->VMEM DMA.
    tile_pix = 8 * _TILE_LANES
    pix_pad = ((n_pix + tile_pix - 1) // tile_pix) * tile_pix
    lanes = pix_pad // 8
    grid = lanes // _TILE_LANES
    x_tile = jnp.pad(x_flat, (0, pix_pad - n_pix)).reshape(8, lanes)
    out_tile = pl.pallas_call(
        _fused_1x1_kernel,
        out_shape=jax.ShapeDtypeStruct((8, lanes), jnp.float32),
        grid=(grid,),
        in_specs=[smem, smem, smem, smem,
                  pl.BlockSpec((8, _TILE_LANES), lambda i: (0, i))],
        out_specs=pl.BlockSpec((8, _TILE_LANES), lambda i: (0, i)),
        compiler_params=pltpu.CompilerParams(
            dimension_semantics=("parallel",)),
    )(*scalars, x_tile)
    return out_tile.reshape(pix_pad)[:n_pix].reshape(N, 1, H, W)


def _reference_forward(x_nchw, params):
    """Pure-JAX reference (sequential conv_1 -> conv_2 -> tanh -> conv_3)."""
    N, C, H, W = x_nchw.shape
    xm = jnp.transpose(x_nchw, (0, 2, 3, 1)).reshape(N * H * W, C)
    y1 = xm @ params["w1"].T + params["b1"]
    y2 = y1 @ params["w2"].T + params["b2"]
    t = jnp.tanh(y2)
    y3 = t @ params["w3"].T + params["b3"]
    return jnp.transpose(y3.reshape(N, H, W, 1), (0, 3, 1, 2))


if __name__ == "__main__":
    key = jax.random.PRNGKey(0)
    kx, kp, kb = jax.random.split(key, 3)
    params = init_params(kp)
    packed = pack_params(params)

    # Spec-sized input: torch.randn(1, 1, 28, 28)  -> gridless single block.
    x1 = jax.random.normal(kx, (1, 1, 28, 28), jnp.float32)
    out1 = jax.block_until_ready(model_tanh_forward(x1, packed))
    ref1 = _reference_forward(x1, params)
    assert out1.shape == (1, 1, 28, 28), out1.shape
    assert jnp.allclose(out1, ref1, atol=1e-4, rtol=1e-4), "small-path mismatch"

    # Modest batched input -> exercises the tiled / parallel-grid path.
    xb = jax.random.normal(kb, (48, 1, 28, 28), jnp.float32)
    outb = jax.block_until_ready(model_tanh_forward(xb, packed))
    refb = _reference_forward(xb, params)
    assert outb.shape == (48, 1, 28, 28), outb.shape
    assert jnp.allclose(outb, refb, atol=1e-4, rtol=1e-4), "grid-path mismatch"

    print("KERNEL_OK")
</pallas_src>

<mosaic_0001>
module attributes {stable_mosaic.version = 11 : i64} {
  func.func @_fused_1x1_kernel(%arg0: memref<8xf32, #tpu.memory_space<smem>>, %arg1: memref<8xf32, #tpu.memory_space<smem>>, %arg2: memref<8xf32, #tpu.memory_space<smem>>, %arg3: memref<1xf32, #tpu.memory_space<smem>>, %arg4: memref<8x98xf32, #tpu.memory_space<vmem>>, %arg5: memref<8x98xf32, #tpu.memory_space<vmem>>) attributes {dimension_semantics = [], scalar_prefetch = 0 : i64, scratch_operands = 0 : i64, tpu.core_type = #tpu.core_type<tc>} {
    %c0 = arith.constant 0 : index
    %c0_0 = arith.constant 0 : index
    %0 = vector.load %arg4[%c0, %c0_0] : memref<8x98xf32, #tpu.memory_space<vmem>>, vector<8x98xf32>
    %c0_1 = arith.constant 0 : index
    %1 = memref.load %arg0[%c0_1] : memref<8xf32, #tpu.memory_space<smem>>
    %2 = vector.broadcast %1 : f32 to vector<8x98xf32>
    %3 = arith.mulf %2, %0 : vector<8x98xf32>
    %c0_2 = arith.constant 0 : index
    %4 = memref.load %arg1[%c0_2] : memref<8xf32, #tpu.memory_space<smem>>
    %5 = vector.broadcast %4 : f32 to vector<8x98xf32>
    %6 = arith.addf %3, %5 : vector<8x98xf32>
    %7 = math.tanh %6 : vector<8x98xf32>
    %c1 = arith.constant 1 : index
    %8 = memref.load %arg0[%c1] : memref<8xf32, #tpu.memory_space<smem>>
    %9 = vector.broadcast %8 : f32 to vector<8x98xf32>
    %10 = arith.mulf %9, %0 : vector<8x98xf32>
    %c1_3 = arith.constant 1 : index
    %11 = memref.load %arg1[%c1_3] : memref<8xf32, #tpu.memory_space<smem>>
    %12 = vector.broadcast %11 : f32 to vector<8x98xf32>
    %13 = arith.addf %10, %12 : vector<8x98xf32>
    %14 = math.tanh %13 : vector<8x98xf32>
    %c2 = arith.constant 2 : index
    %15 = memref.load %arg0[%c2] : memref<8xf32, #tpu.memory_space<smem>>
    %16 = vector.broadcast %15 : f32 to vector<8x98xf32>
    %17 = arith.mulf %16, %0 : vector<8x98xf32>
    %c2_4 = arith.constant 2 : index
    %18 = memref.load %arg1[%c2_4] : memref<8xf32, #tpu.memory_space<smem>>
    %19 = vector.broadcast %18 : f32 to vector<8x98xf32>
    %20 = arith.addf %17, %19 : vector<8x98xf32>
    %21 = math.tanh %20 : vector<8x98xf32>
    %c3 = arith.constant 3 : index
    %22 = memref.load %arg0[%c3] : memref<8xf32, #tpu.memory_space<smem>>
    %23 = vector.broadcast %22 : f32 to vector<8x98xf32>
    %24 = arith.mulf %23, %0 : vector<8x98xf32>
    %c3_5 = arith.constant 3 : index
    %25 = memref.load %arg1[%c3_5] : memref<8xf32, #tpu.memory_space<smem>>
    %26 = vector.broadcast %25 : f32 to vector<8x98xf32>
    %27 = arith.addf %24, %26 : vector<8x98xf32>
    %28 = math.tanh %27 : vector<8x98xf32>
    %c4 = arith.constant 4 : index
    %29 = memref.load %arg0[%c4] : memref<8xf32, #tpu.memory_space<smem>>
    %30 = vector.broadcast %29 : f32 to vector<8x98xf32>
    %31 = arith.mulf %30, %0 : vector<8x98xf32>
    %c4_6 = arith.constant 4 : index
    %32 = memref.load %arg1[%c4_6] : memref<8xf32, #tpu.memory_space<smem>>
    %33 = vector.broadcast %32 : f32 to vector<8x98xf32>
    %34 = arith.addf %31, %33 : vector<8x98xf32>
    %35 = math.tanh %34 : vector<8x98xf32>
    %c5 = arith.constant 5 : index
    %36 = memref.load %arg0[%c5] : memref<8xf32, #tpu.memory_space<smem>>
    %37 = vector.broadcast %36 : f32 to vector<8x98xf32>
    %38 = arith.mulf %37, %0 : vector<8x98xf32>
    %c5_7 = arith.constant 5 : index
    %39 = memref.load %arg1[%c5_7] : memref<8xf32, #tpu.memory_space<smem>>
    %40 = vector.broadcast %39 : f32 to vector<8x98xf32>
    %41 = arith.addf %38, %40 : vector<8x98xf32>
    %42 = math.tanh %41 : vector<8x98xf32>
    %c6 = arith.constant 6 : index
    %43 = memref.load %arg0[%c6] : memref<8xf32, #tpu.memory_space<smem>>
    %44 = vector.broadcast %43 : f32 to vector<8x98xf32>
    %45 = arith.mulf %44, %0 : vector<8x98xf32>
    %c6_8 = arith.constant 6 : index
    %46 = memref.load %arg1[%c6_8] : memref<8xf32, #tpu.memory_space<smem>>
    %47 = vector.broadcast %46 : f32 to vector<8x98xf32>
    %48 = arith.addf %45, %47 : vector<8x98xf32>
    %49 = math.tanh %48 : vector<8x98xf32>
    %c7 = arith.constant 7 : index
    %50 = memref.load %arg0[%c7] : memref<8xf32, #tpu.memory_space<smem>>
    %51 = vector.broadcast %50 : f32 to vector<8x98xf32>
    %52 = arith.mulf %51, %0 : vector<8x98xf32>
    %c7_9 = arith.constant 7 : index
    %53 = memref.load %arg1[%c7_9] : memref<8xf32, #tpu.memory_space<smem>>
    %54 = vector.broadcast %53 : f32 to vector<8x98xf32>
    %55 = arith.addf %52, %54 : vector<8x98xf32>
    %56 = math.tanh %55 : vector<8x98xf32>
    %c0_10 = arith.constant 0 : index
    %57 = memref.load %arg2[%c0_10] : memref<8xf32, #tpu.memory_space<smem>>
    %58 = vector.broadcast %57 : f32 to vector<8x98xf32>
    %59 = arith.mulf %7, %58 : vector<8x98xf32>
    %c1_11 = arith.constant 1 : index
    %60 = memref.load %arg2[%c1_11] : memref<8xf32, #tpu.memory_space<smem>>
    %61 = vector.broadcast %60 : f32 to vector<8x98xf32>
    %62 = arith.mulf %14, %61 : vector<8x98xf32>
    %c2_12 = arith.constant 2 : index
    %63 = memref.load %arg2[%c2_12] : memref<8xf32, #tpu.memory_space<smem>>
    %64 = vector.broadcast %63 : f32 to vector<8x98xf32>
    %65 = arith.mulf %21, %64 : vector<8x98xf32>
    %c3_13 = arith.constant 3 : index
    %66 = memref.load %arg2[%c3_13] : memref<8xf32, #tpu.memory_space<smem>>
    %67 = vector.broadcast %66 : f32 to vector<8x98xf32>
    %68 = arith.mulf %28, %67 : vector<8x98xf32>
    %c4_14 = arith.constant 4 : index
    %69 = memref.load %arg2[%c4_14] : memref<8xf32, #tpu.memory_space<smem>>
    %70 = vector.broadcast %69 : f32 to vector<8x98xf32>
    %71 = arith.mulf %35, %70 : vector<8x98xf32>
    %c5_15 = arith.constant 5 : index
    %72 = memref.load %arg2[%c5_15] : memref<8xf32, #tpu.memory_space<smem>>
    %73 = vector.broadcast %72 : f32 to vector<8x98xf32>
    %74 = arith.mulf %42, %73 : vector<8x98xf32>
    %c6_16 = arith.constant 6 : index
    %75 = memref.load %arg2[%c6_16] : memref<8xf32, #tpu.memory_space<smem>>
    %76 = vector.broadcast %75 : f32 to vector<8x98xf32>
    %77 = arith.mulf %49, %76 : vector<8x98xf32>
    %c7_17 = arith.constant 7 : index
    %78 = memref.load %arg2[%c7_17] : memref<8xf32, #tpu.memory_space<smem>>
    %79 = vector.broadcast %78 : f32 to vector<8x98xf32>
    %80 = arith.mulf %56, %79 : vector<8x98xf32>
    %81 = arith.addf %59, %62 : vector<8x98xf32>
    %82 = arith.addf %65, %68 : vector<8x98xf32>
    %83 = arith.addf %71, %74 : vector<8x98xf32>
    %84 = arith.addf %77, %80 : vector<8x98xf32>
    %85 = arith.addf %81, %82 : vector<8x98xf32>
    %86 = arith.addf %83, %84 : vector<8x98xf32>
    %87 = arith.addf %85, %86 : vector<8x98xf32>
    %c0_18 = arith.constant 0 : index
    %88 = memref.load %arg3[%c0_18] : memref<1xf32, #tpu.memory_space<smem>>
    %89 = vector.broadcast %88 : f32 to vector<8x98xf32>
    %90 = arith.addf %87, %89 : vector<8x98xf32>
    %c0_19 = arith.constant 0 : index
    %c0_20 = arith.constant 0 : index
    %91 = vector.load %arg5[%c0_19, %c0_20] : memref<8x98xf32, #tpu.memory_space<vmem>>, vector<8x98xf32>
    tpu.vector_store %arg5[%c0_19, %c0_20], %90 {strides = array<i32>} : memref<8x98xf32, #tpu.memory_space<vmem>>, vector<8x98xf32>,
    return
  }
}

</mosaic_0001>

<llo_original>
// kernel: tpu_custom_call.1
$region0: #{tpu_custom_call.1}
  #allocation0 [shape = 'u32[]', space=smem, size = 0x4, offset = 0x4, fixed_abs, tag = 'smem constant byte address 0x4 - core index']
  #allocation1 [shape = 'u32[144,128]{1,0:T(1,128)}', space=vmem, size = 0x12000, scoped, tag = 'internal scratch']
  #allocation2 [shape = 'f32[1]{0:T(128)S(6)}', space=smem, size = 0x200, scoped, tag = 'scoped memory for tpu_custom_call.1']
  %s0 = inlined_call_operand.vmem [shape: f32[8], index: 0, kind: input, shape index: {}]
  %s1 = inlined_call_operand.vmem [shape: f32[8], index: 1, kind: input, shape index: {}]
  %s2 = inlined_call_operand.vmem [shape: f32[8], index: 2, kind: input, shape index: {}]
  %s3 = inlined_call_operand.<no memory space> [shape: f32[1], index: 3, kind: input, shape index: {}]
  %s4 = inlined_call_operand.vmem [shape: f32[8,98], index: 4, kind: input, shape index: {}]
  %s5 = inlined_call_operand.hbm [shape: f32[8,98], index: 5, kind: output, shape index: {}]
  %s6 = sld [smem:[#allocation0]]
  $region42: #{tpu_custom_call.1} parent=0
    _
  %s8 = ssub.s32 1, %s6
  %s9 = scalar_select 0, %s8, %s6
  %10 = sst [smem:[#allocation2]] %s3
  $region1: #{tpu_custom_call.1} parent=0
    #allocation3 [shape = 'u8[512]{0}', space=smem, size = 0x200, scoped, tag = 'input window, operand 0, single buffered']
    #allocation4 [shape = 's32[1]{0}', space=sflag, size = 0x4, scoped, tag = 'scoped memory for tpu_custom_call.1']
    #allocation5 [shape = 's32[1]{0}', space=sflag, size = 0x4, scoped, tag = 'scoped memory for tpu_custom_call.1']
    #allocation6 [shape = 'u8[512]{0}', space=smem, size = 0x200, scoped, tag = 'input window, operand 1, single buffered']
    #allocation7 [shape = 's32[1]{0}', space=sflag, size = 0x4, scoped, tag = 'scoped memory for tpu_custom_call.1']
    #allocation8 [shape = 'u8[512]{0}', space=smem, size = 0x200, scoped, tag = 'input window, operand 2, single buffered']
    #allocation9 [shape = 'u8[4096]{0}', space=vmem, size = 0x1000, scoped, tag = 'output window, operand 0, single buffered']
    %11 = vsyncpa [#allocation5], 0
    %12 = vsyncpa [#allocation7], 0
    %13 = vsyncpa [#allocation4], 0
    // Predicated region
    $region2: #{tpu_custom_call.1} parent=1 // pred_check
      _
    $region3: #{tpu_custom_call.1} parent=1 // pred_check_branch
      %15 = sbr.rel (0) target = $region5
    $region4: #{tpu_custom_call.1} parent=1 // pred_region
      %s17 = ssub.s32 16, 16
      %18 = vsyncadd [#allocation5], %s17
      %s20 = sshll.u32 %s0, 4
      %s21 = int_to_ptr.vmem [resolvable:$true] %s20
      %23 = dma.vmem_to_smem %s21, 16, [#allocation3], [#allocation5]
    $region5: #{tpu_custom_call.1} parent=1 // pred_fallthru
      _
    // Predicated region
    $region6: #{tpu_custom_call.1} parent=1 // pred_check
      _
    $region7: #{tpu_custom_call.1} parent=1 // pred_check_branch
      %25 = sbr.rel (0) target = $region9
    $region8: #{tpu_custom_call.1} parent=1 // pred_region
      %s27 = ssub.s32 16, 16
      %28 = vsyncadd [#allocation7], %s27
      %s30 = sshll.u32 %s1, 4
      %s31 = int_to_ptr.vmem [resolvable:$true] %s30
      %33 = dma.vmem_to_smem %s31, 16, [#allocation6], [#allocation7]
    $region9: #{tpu_custom_call.1} parent=1 // pred_fallthru
      _
    // Predicated region
    $region10: #{tpu_custom_call.1} parent=1 // pred_check
      _
    $region11: #{tpu_custom_call.1} parent=1 // pred_check_branch
      %35 = sbr.rel (0) target = $region13
    $region12: #{tpu_custom_call.1} parent=1 // pred_region
      %s37 = ssub.s32 16, 16
      %38 = vsyncadd [#allocation7], %s37
      %s40 = sshll.u32 %s2, 4
      %s41 = int_to_ptr.vmem [resolvable:$true] %s40
      %43 = dma.vmem_to_smem %s41, 16, [#allocation8], [#allocation7]
    $region13: #{tpu_custom_call.1} parent=1 // pred_fallthru
      _
    // Predicated region
    $region14: #{tpu_custom_call.1} parent=1 // pred_check
      _
    $region15: #{tpu_custom_call.1} parent=1 // pred_check_branch
      %45 = sbr.rel (0) target = $region17
    $region16: #{tpu_custom_call.1} parent=1 // pred_region
      _
    $region17: #{tpu_custom_call.1} parent=1 // pred_fallthru
      _
    // Predicated region
    $region18: #{tpu_custom_call.1} parent=1 // pred_check
      _
    $region19: #{tpu_custom_call.1} parent=1 // pred_check_branch
      %47 = sbr.rel (0) target = $region21
    $region20: #{tpu_custom_call.1} parent=1 // pred_region
      _
    $region21: #{tpu_custom_call.1} parent=1 // pred_fallthru
      _
    // Predicated region
    $region22: #{tpu_custom_call.1} parent=1 // pred_check
      _
    $region23: #{tpu_custom_call.1} parent=1 // pred_check_branch
      %49 = sbr.rel (0) target = $region25
    $region24: #{tpu_custom_call.1} parent=1 // pred_region
      %50 = dma.done [#allocation5], 16
    $region25: #{tpu_custom_call.1} parent=1 // pred_fallthru
      _
    // Predicated region
    $region26: #{tpu_custom_call.1} parent=1 // pred_check
      _
    $region27: #{tpu_custom_call.1} parent=1 // pred_check_branch
      %52 = sbr.rel (0) target = $region29
    $region28: #{tpu_custom_call.1} parent=1 // pred_region
      %53 = dma.done [#allocation7], 16
    $region29: #{tpu_custom_call.1} parent=1 // pred_fallthru
      _
    // Predicated region
    $region30: #{tpu_custom_call.1} parent=1 // pred_check
      _
    $region31: #{tpu_custom_call.1} parent=1 // pred_check_branch
      %55 = sbr.rel (0) target = $region33
    $region32: #{tpu_custom_call.1} parent=1 // pred_region
      %56 = dma.done [#allocation7], 16
    $region33: #{tpu_custom_call.1} parent=1 // pred_fallthru
      _
    %57 = sfence
    %v58 = vld [vmem:[%s4] sm:$0xff]
    %s59 = sld [smem:[#allocation3]]
    %v60 = vstv %s59
    %v61 = vmul.f32 %v60, %v58
    %s62 = sld [smem:[#allocation6]]
    %v63 = vstv %s62
    %v64 = vadd.f32 %v61, %v63
    %v65 = vtanh.pop %v64
    %s66 = sld [smem:[#allocation3 + $0x1]]
    %v67 = vstv %s66
    %v68 = vmul.f32 %v67, %v58
    %s69 = sld [smem:[#allocation6 + $0x1]]
    %v70 = vstv %s69
    %v71 = vadd.f32 %v68, %v70
    %v72 = vtanh.pop %v71
    %s73 = sld [smem:[#allocation3 + $0x2]]
    %v74 = vstv %s73
    %v75 = vmul.f32 %v74, %v58
    %s76 = sld [smem:[#allocation6 + $0x2]]
    %v77 = vstv %s76
    %v78 = vadd.f32 %v75, %v77
    %v79 = vtanh.pop %v78
    %s80 = sld [smem:[#allocation3 + $0x3]]
    %v81 = vstv %s80
    %v82 = vmul.f32 %v81, %v58
    %s83 = sld [smem:[#allocation6 + $0x3]]
    %v84 = vstv %s83
    %v85 = vadd.f32 %v82, %v84
    %v86 = vtanh.pop %v85
    %s87 = sld [smem:[#allocation3 + $0x4]]
    %v88 = vstv %s87
    %v89 = vmul.f32 %v88, %v58
    %s90 = sld [smem:[#allocation6 + $0x4]]
    %v91 = vstv %s90
    %v92 = vadd.f32 %v89, %v91
    %v93 = vtanh.pop %v92
    %s94 = sld [smem:[#allocation3 + $0x5]]
    %v95 = vstv %s94
    %v96 = vmul.f32 %v95, %v58
    %s97 = sld [smem:[#allocation6 + $0x5]]
    %v98 = vstv %s97
    %v99 = vadd.f32 %v96, %v98
    %v100 = vtanh.pop %v99
    %s101 = sld [smem:[#allocation3 + $0x6]]
    %v102 = vstv %s101
    %v103 = vmul.f32 %v102, %v58
    %s104 = sld [smem:[#allocation6 + $0x6]]
    %v105 = vstv %s104
    %v106 = vadd.f32 %v103, %v105
    %v107 = vtanh.pop %v106
    %s108 = sld [smem:[#allocation3 + $0x7]]
    %v109 = vstv %s108
    %v110 = vmul.f32 %v109, %v58
    %s111 = sld [smem:[#allocation6 + $0x7]]
    %v112 = vstv %s111
    %v113 = vadd.f32 %v110, %v112
    %v114 = vtanh.pop %v113
    %s115 = sld [smem:[#allocation8]]
    %v116 = vstv %s115
    %v117 = vmul.f32 %v65, %v116
    %s118 = sld [smem:[#allocation8 + $0x1]]
    %v119 = vstv %s118
    %v120 = vmul.f32 %v72, %v119
    %s121 = sld [smem:[#allocation8 + $0x2]]
    %v122 = vstv %s121
    %v123 = vmul.f32 %v79, %v122
    %s124 = sld [smem:[#allocation8 + $0x3]]
    %v125 = vstv %s124
    %v126 = vmul.f32 %v86, %v125
    %s127 = sld [smem:[#allocation8 + $0x4]]
    %v128 = vstv %s127
    %v129 = vmul.f32 %v93, %v128
    %s130 = sld [smem:[#allocation8 + $0x5]]
    %v131 = vstv %s130
    %v132 = vmul.f32 %v100, %v131
    %s133 = sld [smem:[#allocation8 + $0x6]]
    %v134 = vstv %s133
    %v135 = vmul.f32 %v107, %v134
    %s136 = sld [smem:[#allocation8 + $0x7]]
    %v137 = vstv %s136
    %v138 = vmul.f32 %v114, %v137
    %v139 = vadd.f32 %v117, %v120
    %v140 = vadd.f32 %v123, %v126
    %v141 = vadd.f32 %v129, %v132
    %v142 = vadd.f32 %v135, %v138
    %v143 = vadd.f32 %v139, %v140
    %v144 = vadd.f32 %v141, %v142
    %v145 = vadd.f32 %v143, %v144
    %s146 = sld [smem:[#allocation2]]
    %v147 = vstv %s146
    %v148 = vadd.f32 %v145, %v147
    %vm149 = vcmask 801792
    %150 = vst.msk [vmem:[#allocation9] sm:$0xff] %vm149, %v148
    // Predicated region
    $region34: #{tpu_custom_call.1} parent=1 // pred_check
      _
    $region35: #{tpu_custom_call.1} parent=1 // pred_check_branch
      %152 = sbr.rel (0) target = $region37
    $region36: #{tpu_custom_call.1} parent=1 // pred_region
      %s154 = ssub.s32 128, 128
      %155 = vsyncadd [#allocation4], %s154
      %s157 = sshll.u32 [#allocation9], 4
      %s158 = int_to_ptr.vmem [resolvable:$true] %s157
      %160 = dma.vmem_to_hbm [thread:$0]  %s158, 128, %s5, [#allocation4]
    $region37: #{tpu_custom_call.1} parent=1 // pred_fallthru
      _
    // Predicated region
    $region38: #{tpu_custom_call.1} parent=1 // pred_check
      _
    $region39: #{tpu_custom_call.1} parent=1 // pred_check_branch
      %162 = sbr.rel (0) target = $region41
    $region40: #{tpu_custom_call.1} parent=1 // pred_region
      %163 = dma.done [#allocation4], 128
    $region41: #{tpu_custom_call.1} parent=1 // pred_fallthru
      _
    %164 = vsyncpa [#allocation4], 1
    %165 = vsyncpa [#allocation5], 1
    %166 = vsyncpa [#allocation7], 1

</llo_original>
